<compile_context>
chip_gen: v5e
topology: v5e:2x2
jax: 0.10.0
libtpu: 0.0.40
codegen_flags: <defaults>
</compile_context>

<pallas_src>
import jax
import jax.numpy as jnp
from jax.experimental import pallas as pl
from jax.experimental.pallas import tpu as pltpu


def _copy_kernel(x_ref, o_ref):
    # Pure identity copy of a lane-dense 2-D tile; the "flatten" already
    # happened as a zero-cost metadata reshape in the wrapper.
    o_ref[...] = x_ref[...]


def _cdiv(a, b):
    return -(-a // b)


def _sublane_multiple(dtype):
    # Packed-sublane multiple: 8 for 4-byte, 16 for 2-byte, 32 for 1-byte dtypes.
    itemsize = jnp.dtype(dtype).itemsize
    return max(8, 32 // max(1, itemsize))


def _generation_defaults():
    """(max_block_bytes, vmem_limit_bytes) — conservative for v7x (64 MiB VMEM
    per TC), larger tiles when 128 MiB VMEM (v5e/v6e) is detected."""
    max_block_bytes, vmem_limit = 4 << 20, 32 << 20
    try:
        info = pltpu.get_tpu_info()
        if getattr(info, "vmem_capacity_bytes", 0) >= (96 << 20):
            max_block_bytes, vmem_limit = 8 << 20, 64 << 20
    except Exception:
        pass  # keep the everywhere-safe defaults
    return max_block_bytes, vmem_limit


def _lane_dense_slab(n, flat):
    """Re-view the contiguous (n*flat) buffer as (rows, L), L a large multiple
    of 128, so the identity copy uses unmasked lane-dense stores even when
    `flat` is small (e.g. (N,C,1,1)) or not a multiple of 128."""
    total = n * flat
    if flat >= 128 and flat % 128 == 0:
        return n, flat
    if total % 128 != 0:
        # Cannot make lane-dense without padding; Pallas masks the edge block.
        return n, flat
    for k in range(256, 0, -1):          # largest L = 128*k <= 32768 dividing total
        L = 128 * k
        if total % L == 0:
            return total // L, L
    return n, flat                        # unreachable (k=1 always divides)


def _choose_tiles(r, c, itemsize, sub, max_block_bytes):
    """Pick (tb, tf) obeying the (8,128)/full-extent rule and the VMEM budget."""
    slab_bytes = r * c * itemsize
    if slab_bytes <= max_block_bytes:
        # Single-block case: if the slab is large-ish and splittable, split the
        # row axis so one parallel grid axis has extent >= 2 (v7x 2-TC streaming).
        if r >= 2 * sub and slab_bytes > (1 << 20):
            tb = _cdiv(_cdiv(r, 2), sub) * sub
            return tb, c
        return r, c

    row_bytes = c * itemsize
    # Full-row blocks only if at least `sub` rows fit the budget (prevents the
    # previous 8x budget blow-out when one row nearly fills the budget).
    if sub * row_bytes <= max_block_bytes:
        tb = (max_block_bytes // row_bytes) // sub * sub
        return min(tb, r), c

    # Huge rows: keep the sublane dim legal (multiple of `sub` or full extent)
    # and tile the lane axis in multiples of 128 within the budget.
    tb = min(r, sub)
    tf = (max_block_bytes // (tb * itemsize)) // 128 * 128
    tf = max(128, tf)
    return tb, min(tf, c)


def flatten_layer(x):
    """FlattenLayer.forward: x.view(x.shape[0], -1).

    On contiguous data this is a free metadata reshape — the recommended path
    when no pallas_call boundary is required (zero HBM traffic).
    """
    n = x.shape[0]
    flat = 1
    for d in x.shape[1:]:
        flat *= d
    return jnp.reshape(x, (n, flat))


def flatten_layer_pallas(x, *, max_block_bytes=None, vmem_limit_bytes=None):
    """Same semantics, routed through an explicit Pallas identity-copy kernel
    (for when a kernel boundary / materialized copy is required)."""
    n = x.shape[0]
    flat = 1
    for d in x.shape[1:]:
        flat *= d

    if max_block_bytes is None or vmem_limit_bytes is None:
        mb, vl = _generation_defaults()
        max_block_bytes = max_block_bytes or mb
        vmem_limit_bytes = vmem_limit_bytes or vl

    itemsize = jnp.dtype(x.dtype).itemsize
    sub = _sublane_multiple(x.dtype)

    # Free metadata reshapes: flatten, then re-view as a lane-dense slab.
    r, c = _lane_dense_slab(n, flat)
    x_slab = jnp.reshape(x, (r, c))

    tb, tf = _choose_tiles(r, c, itemsize, sub, max_block_bytes)
    grid = (_cdiv(r, tb), _cdiv(c, tf))

    out = pl.pallas_call(
        _copy_kernel,
        out_shape=jax.ShapeDtypeStruct((r, c), x.dtype),
        grid=grid,
        in_specs=[pl.BlockSpec((tb, tf), lambda i, j: (i, j))],
        out_specs=pl.BlockSpec((tb, tf), lambda i, j: (i, j)),
        compiler_params=pltpu.CompilerParams(
            # No carried state -> both axes parallel; shards across both TCs on
            # v7x, harmless no-op on single-TC v5e/v6e.
            dimension_semantics=("parallel", "parallel"),
            vmem_limit_bytes=vmem_limit_bytes,
        ),
        # TODO(synk): add input_output_aliases={0: 0} when the caller donates x
        # (footprint win); without donation XLA would insert an extra copy.
    )(x_slab)

    # Free reshape back to the logical flattened shape.
    return jnp.reshape(out, (n, flat))


if __name__ == "__main__":
    key = jax.random.PRNGKey(0)
    # NCHW, consistent with a conv-style feature map feeding FlattenLayer.
    x = jax.random.normal(key, (2, 4, 16, 16), dtype=jnp.float32)

    out = flatten_layer_pallas(x)
    out = jax.block_until_ready(out)

    # Reference: the zero-traffic view path (== torch .view on contiguous NCHW).
    ref = flatten_layer(x)
    assert out.shape == (2, 4 * 16 * 16), out.shape
    assert out.dtype == x.dtype
    assert jnp.array_equal(out, ref)

    print("KERNEL_OK")
</pallas_src>

<mosaic_0001>
module attributes {stable_mosaic.version = 11 : i64} {
  func.func @_copy_kernel(%arg0: i32, %arg1: i32, %arg2: memref<2x1024xf32, #tpu.memory_space<vmem>>, %arg3: memref<2x1024xf32, #tpu.memory_space<vmem>>) attributes {dimension_semantics = [#tpu.dimension_semantics<parallel>, #tpu.dimension_semantics<parallel>], iteration_bounds = array<i64: 1, 1>, scalar_prefetch = 0 : i64, scratch_operands = 0 : i64, tpu.core_type = #tpu.core_type<tc>, window_params = [{transform_indices = @transform_0, window_bounds = array<i64: 2, 1024>}, {transform_indices = @transform_1, window_bounds = array<i64: 2, 1024>}]} {
    %c0 = arith.constant 0 : index
    %c0_0 = arith.constant 0 : index
    %0 = vector.load %arg2[%c0, %c0_0] : memref<2x1024xf32, #tpu.memory_space<vmem>>, vector<2x1024xf32>
    %c0_1 = arith.constant 0 : index
    %c0_2 = arith.constant 0 : index
    %1 = vector.load %arg3[%c0_1, %c0_2] : memref<2x1024xf32, #tpu.memory_space<vmem>>, vector<2x1024xf32>
    tpu.vector_store %arg3[%c0_1, %c0_2], %0 {strides = array<i32>} : memref<2x1024xf32, #tpu.memory_space<vmem>>, vector<2x1024xf32>,
    return
  }
  func.func @transform_0(%arg0: i32, %arg1: i32) -> (i32, i32) {
    %c0_i32 = arith.constant 0 : i32
    return %arg0, %arg1 : i32, i32
  }
  func.func @transform_1(%arg0: i32, %arg1: i32) -> (i32, i32) {
    %c0_i32 = arith.constant 0 : i32
    return %arg0, %arg1 : i32, i32
  }
}

</mosaic_0001>

<llo_original>
// kernel: tpu_custom_call.1
$region0: #{tpu_custom_call.1}
  #allocation0 [shape = 'u32[]', space=smem, size = 0x4, offset = 0x4, fixed_abs, tag = 'smem constant byte address 0x4 - core index']
  #allocation1 [shape = 'u32[72,128]{1,0:T(1,128)}', space=vmem, size = 0x9000, scoped, tag = 'internal scratch']
  %s0 = inlined_call_operand.hbm [shape: f32[2,1024], index: 0, kind: input, shape index: {}]
  %s1 = inlined_call_operand.hbm [shape: f32[2,1024], index: 1, kind: output, shape index: {}]
  %s2 = sld [smem:[#allocation0]]
  $region18: #{tpu_custom_call.1} parent=0
    _
  %s4 = ssub.s32 1, %s2
  %s5 = scalar_select 0, %s4, %s2
  $region1: #{tpu_custom_call.1} parent=0
    #allocation2 [shape = 'u8[8192]{0}', space=vmem, size = 0x2000, scoped, tag = 'input window, operand 0, single buffered']
    #allocation3 [shape = 's32[1]{0}', space=sflag, size = 0x4, scoped, tag = 'scoped memory for tpu_custom_call.1']
    #allocation4 [shape = 's32[1]{0}', space=sflag, size = 0x4, scoped, tag = 'scoped memory for tpu_custom_call.1']
    #allocation5 [shape = 'u8[8192]{0}', space=vmem, size = 0x2000, scoped, tag = 'output window, operand 0, single buffered']
    %6 = vsyncpa [#allocation3], 0
    %7 = vsyncpa [#allocation4], 0
    // Predicated region
    $region2: #{tpu_custom_call.1} parent=1 // pred_check
      _
    $region3: #{tpu_custom_call.1} parent=1 // pred_check_branch
      %9 = sbr.rel (0) target = $region5
    $region4: #{tpu_custom_call.1} parent=1 // pred_region
      %11 = vsyncadd [#allocation3], 0
      %s13 = sshll.u32 %s0, 4
      %s14 = int_to_ptr.hbm [resolvable:$true] %s13
      %s15 = sshll.u32 [#allocation2], 4
      %s16 = int_to_ptr.vmem [resolvable:$true] %s15
      %18 = dma.hbm_to_vmem [thread:$0]  %s14, 256, %s16, [#allocation3]
    $region5: #{tpu_custom_call.1} parent=1 // pred_fallthru
      _
    // Predicated region
    $region6: #{tpu_custom_call.1} parent=1 // pred_check
      _
    $region7: #{tpu_custom_call.1} parent=1 // pred_check_branch
      %20 = sbr.rel (0) target = $region9
    $region8: #{tpu_custom_call.1} parent=1 // pred_region
      %22 = dma.done [#allocation3], 256
    $region9: #{tpu_custom_call.1} parent=1 // pred_fallthru
      _
    %v23 = vld [vmem:[#allocation2] sm:$0xff]
    %v24 = vld [vmem:[#allocation2 + $0x8] sm:$0xff]
    %25 = vst [vmem:[#allocation5] sm:$0xff] %v23
    %26 = vst [vmem:[#allocation5 + $0x8] sm:$0xff] %v24
    // Predicated region
    $region10: #{tpu_custom_call.1} parent=1 // pred_check
      _
    $region11: #{tpu_custom_call.1} parent=1 // pred_check_branch
      %28 = sbr.rel (0) target = $region13
    $region12: #{tpu_custom_call.1} parent=1 // pred_region
      %30 = vsyncadd [#allocation4], 0
      %s32 = sshll.u32 [#allocation5], 4
      %s33 = int_to_ptr.vmem [resolvable:$true] %s32
      %s34 = sshll.u32 %s1, 4
      %s35 = int_to_ptr.hbm [resolvable:$true] %s34
      %37 = dma.vmem_to_hbm [thread:$0]  %s33, 256, %s35, [#allocation4]
    $region13: #{tpu_custom_call.1} parent=1 // pred_fallthru
      _
    // Predicated region
    $region14: #{tpu_custom_call.1} parent=1 // pred_check
      _
    $region15: #{tpu_custom_call.1} parent=1 // pred_check_branch
      %39 = sbr.rel (0) target = $region17
    $region16: #{tpu_custom_call.1} parent=1 // pred_region
      %41 = dma.done [#allocation4], 256
    $region17: #{tpu_custom_call.1} parent=1 // pred_fallthru
      _
    %42 = vsyncpa [#allocation3], 1
    %43 = vsyncpa [#allocation4], 1

</llo_original>
